<compile_context>
chip_gen: v7x
topology: tpu7x:2x2x1
jax: 0.10.0
libtpu: 0.0.40
codegen_flags: <defaults>
</compile_context>

<pallas_src>
import functools

import jax
import jax.numpy as jnp
from jax.experimental import pallas as pl
from jax.experimental.pallas import tpu as pltpu


def _round_up(x, m):
    return ((x + m - 1) // m) * m


def _actor_critic_kernel(x_ref, p1_ref, p2_ref, ph_ref, out_ref,
                         *, s_rows, hidden_dim, action_dim):
    """One batch tile: trunk (fc1->relu->fc2->relu) + fused heads.

    p1 = [w1(padded rows); b1]  shape [s_rows+1, hidden]
    p2 = [w2; b2]               shape [hidden+1, hidden]
    ph = [Wh; bh]               shape [hidden+1, HEAD_PAD] (Wh = [wm | ws | wv | 0-pad])
    out slab columns: [0:A) mean, [A:2A) std, [2A] value, rest padding.
    """
    cdt = x_ref.dtype  # MXU compute dtype (bf16 on the fast path, or f32)

    x = x_ref[...]
    w1 = p1_ref[:s_rows, :]
    b1 = p1_ref[s_rows:s_rows + 1, :].astype(jnp.float32)
    w2 = p2_ref[:hidden_dim, :]
    b2 = p2_ref[hidden_dim:hidden_dim + 1, :].astype(jnp.float32)
    wh = ph_ref[:hidden_dim, :]
    bh = ph_ref[hidden_dim:hidden_dim + 1, :].astype(jnp.float32)

    # Trunk: dots feed the MXU in `cdt`, accumulate in f32; elementwise path is
    # f32 everywhere (v5e has no bf16 VPU/EUP).
    h1 = jnp.maximum(jnp.dot(x, w1, preferred_element_type=jnp.float32) + b1, 0.0)
    h2 = jnp.maximum(
        jnp.dot(h1.astype(cdt), w2, preferred_element_type=jnp.float32) + b2, 0.0)

    # Single fused head matmul -> lane-dense slab.
    heads = jnp.dot(h2.astype(cdt), wh, preferred_element_type=jnp.float32) + bh

    # clamp+exp only on the log_std lanes, then ONE unmasked full-width store.
    lane = jax.lax.broadcasted_iota(jnp.int32, heads.shape, 1)
    is_std = jnp.logical_and(lane >= action_dim, lane < 2 * action_dim)
    std_all = jnp.exp(jnp.clip(heads, -20.0, 2.0))  # EUP work; padded lanes discarded
    out_ref[...] = jnp.where(is_std, std_all, heads).astype(out_ref.dtype)


def pack_params(params, *, use_bf16=True):
    """Pack (and optionally bf16-cast) parameters ONCE, outside the hot path."""
    state_dim, hidden_dim = params["w1"].shape
    action_dim = params["wm"].shape[1]

    wdt = jnp.bfloat16 if use_bf16 else jnp.float32
    s_rows = _round_up(state_dim, 8)          # sublane-aligned bias-row offset
    head_w = 2 * action_dim + 1
    head_pad = _round_up(head_w, 128)         # lane-dense output width

    w1 = jnp.pad(params["w1"], ((0, s_rows - state_dim), (0, 0)))
    p1 = jnp.concatenate([w1, params["b1"]], axis=0).astype(wdt)          # [s_rows+1, H]
    p2 = jnp.concatenate([params["w2"], params["b2"]], axis=0).astype(wdt)  # [H+1, H]
    wh = jnp.concatenate([params["wm"], params["ws"], params["wv"]], axis=1)
    bh = jnp.concatenate([params["bm"], params["bs"], params["bv"]], axis=1)
    ph = jnp.concatenate([wh, bh], axis=0)
    ph = jnp.pad(ph, ((0, 0), (0, head_pad - head_w))).astype(wdt)        # [H+1, head_pad]

    return dict(p1=p1, p2=p2, ph=ph,
                state_dim=state_dim, s_rows=s_rows, hidden_dim=hidden_dim,
                action_dim=action_dim, head_pad=head_pad, use_bf16=use_bf16)


def actor_critic_forward(state, packed, *, block_b=1024):
    """state: [B, state_dim] f32; packed: output of pack_params.
    Returns (mean, std, value) as f32."""
    B, state_dim = state.shape
    assert state_dim == packed["state_dim"]
    s_rows = packed["s_rows"]
    hidden_dim = packed["hidden_dim"]
    action_dim = packed["action_dim"]
    head_pad = packed["head_pad"]
    use_bf16 = packed["use_bf16"]
    p1, p2, ph = packed["p1"], packed["p2"], packed["ph"]

    io_dt = jnp.bfloat16 if use_bf16 else jnp.float32

    x = state
    if s_rows != state_dim:
        x = jnp.pad(x, ((0, 0), (0, s_rows - state_dim)))
    x = x.astype(io_dt)

    # --- Batch tiling: big sublane-aligned tiles, but >=2 grid steps when
    # possible so dimension_semantics=("parallel",) uses both TCs on v7x. ---
    align = 16 if use_bf16 else 8
    if B <= align:
        tb = B  # single full-extent tile
    else:
        tb = min(block_b, B, _round_up(pl.cdiv(B, 2), align))
        tb = max(align, (tb // align) * align)
    grid = (pl.cdiv(B, tb),)

    kernel = functools.partial(
        _actor_critic_kernel,
        s_rows=s_rows, hidden_dim=hidden_dim, action_dim=action_dim,
    )

    w_bytes = (p1.size + p2.size + ph.size) * p1.dtype.itemsize
    out_itemsize = jnp.dtype(io_dt).itemsize
    flops = 2 * B * (s_rows * hidden_dim
                     + hidden_dim * hidden_dim
                     + hidden_dim * head_pad)
    bytes_accessed = (x.size * x.dtype.itemsize + w_bytes
                      + B * head_pad * out_itemsize)
    cost = pl.CostEstimate(flops=flops,
                           transcendentals=B * head_pad,
                           bytes_accessed=bytes_accessed)

    # VMEM budget: double-buffered x/out tiles + double-buffered resident
    # weights + f32 intermediates (with 2x headroom); floor = 32 MiB default.
    vmem_est = (2 * tb * (s_rows * x.dtype.itemsize + head_pad * out_itemsize)
                + 2 * w_bytes
                + 4 * tb * (2 * hidden_dim + 3 * head_pad))
    vmem_limit = max(32 * 1024 * 1024, min(2 * vmem_est, 128 * 1024 * 1024))

    slab = pl.pallas_call(
        kernel,
        out_shape=jax.ShapeDtypeStruct((B, head_pad), io_dt),
        grid_spec=pltpu.PrefetchScalarGridSpec(
            num_scalar_prefetch=0,
            grid=grid,
            in_specs=[
                pl.BlockSpec((tb, s_rows), lambda i: (i, 0)),  # x: blocked on batch
                # Resident packed weights (constant index_map -> stay in VMEM).
                # TODO(synk): pipeline_mode=pl.Buffered(1) would single-buffer
                # them; negligible at this hidden_dim so left at the default.
                pl.BlockSpec(p1.shape, lambda i: (0, 0)),
                pl.BlockSpec(p2.shape, lambda i: (0, 0)),
                pl.BlockSpec(ph.shape, lambda i: (0, 0)),
            ],
            out_specs=pl.BlockSpec((tb, head_pad), lambda i: (i, 0)),
        ),
        compiler_params=pltpu.CompilerParams(
            dimension_semantics=("parallel",),   # shard batch tiles across TCs on v7x
            vmem_limit_bytes=vmem_limit,
        ),
        cost_estimate=cost,
    )(x, p1, p2, ph)

    # Slice the lane-dense slab back into the three outputs (cheap XLA slices;
    # fused into the consumer under jit).
    mean = slab[:, :action_dim].astype(jnp.float32)
    std = slab[:, action_dim:2 * action_dim].astype(jnp.float32)
    value = slab[:, 2 * action_dim:2 * action_dim + 1].astype(jnp.float32)
    return mean, std, value


def init_params(key, state_dim, action_dim, hidden_dim):
    """PyTorch-Linear-style init: U(-1/sqrt(fan_in), 1/sqrt(fan_in)).
    Weights stored as [in, out]; biases as [1, out] for lane broadcast."""
    def linear(k, fan_in, fan_out):
        kw, kb = jax.random.split(k)
        bound = 1.0 / jnp.sqrt(float(fan_in))
        w = jax.random.uniform(kw, (fan_in, fan_out), jnp.float32, -bound, bound)
        b = jax.random.uniform(kb, (1, fan_out), jnp.float32, -bound, bound)
        return w, b

    ks = jax.random.split(key, 5)
    w1, b1 = linear(ks[0], state_dim, hidden_dim)
    w2, b2 = linear(ks[1], hidden_dim, hidden_dim)
    wm, bm = linear(ks[2], hidden_dim, action_dim)
    ws, bs = linear(ks[3], hidden_dim, action_dim)
    wv, bv = linear(ks[4], hidden_dim, 1)
    return dict(w1=w1, b1=b1, w2=w2, b2=b2,
                wm=wm, bm=bm, ws=ws, bs=bs, wv=wv, bv=bv)


def reference_forward(state, p):
    h1 = jnp.maximum(state @ p["w1"] + p["b1"], 0.0)
    h2 = jnp.maximum(h1 @ p["w2"] + p["b2"], 0.0)
    mean = h2 @ p["wm"] + p["bm"]
    log_std = jnp.clip(h2 @ p["ws"] + p["bs"], -20.0, 2.0)
    std = jnp.exp(log_std)
    value = h2 @ p["wv"] + p["bv"]
    return mean, std, value


if __name__ == "__main__":
    # Small, lane-friendly demo shapes.
    B, state_dim, action_dim, hidden_dim = 64, 16, 8, 128

    key = jax.random.PRNGKey(0)
    k_state, k_params = jax.random.split(key)

    state = jax.random.normal(k_state, (B, state_dim), jnp.float32)
    params = init_params(k_params, state_dim, action_dim, hidden_dim)
    r_mean, r_std, r_value = reference_forward(state, params)

    # --- f32 path: exact-ish, tight tolerance. ---
    packed_f32 = pack_params(params, use_bf16=False)
    mean, std, value = actor_critic_forward(state, packed_f32)
    jax.block_until_ready((mean, std, value))
    assert mean.shape == (B, action_dim)
    assert std.shape == (B, action_dim)
    assert value.shape == (B, 1)
    assert jnp.allclose(mean, r_mean, atol=1e-4, rtol=1e-4)
    assert jnp.allclose(std, r_std, atol=1e-4, rtol=1e-4)
    assert jnp.allclose(value, r_value, atol=1e-4, rtol=1e-4)

    # --- bf16 path (default; halved HBM traffic): looser tolerance. ---
    packed_bf16 = pack_params(params, use_bf16=True)
    mean, std, value = actor_critic_forward(state, packed_bf16)
    jax.block_until_ready((mean, std, value))
    assert mean.shape == (B, action_dim)
    assert std.shape == (B, action_dim)
    assert value.shape == (B, 1)
    assert jnp.allclose(mean, r_mean, atol=5e-2, rtol=5e-2)
    assert jnp.allclose(std, r_std, atol=5e-2, rtol=5e-2)
    assert jnp.allclose(value, r_value, atol=5e-2, rtol=5e-2)

    print("KERNEL_OK")
</pallas_src>

<mosaic_0001>
module attributes {stable_mosaic.version = 11 : i64} {
  func.func @_actor_critic_kernel(%arg0: i32, %arg1: memref<32x16xf32, #tpu.memory_space<vmem>>, %arg2: memref<17x128xf32, #tpu.memory_space<vmem>>, %arg3: memref<129x128xf32, #tpu.memory_space<vmem>>, %arg4: memref<129x128xf32, #tpu.memory_space<vmem>>, %arg5: memref<32x128xf32, #tpu.memory_space<vmem>>) attributes {dimension_semantics = [#tpu.dimension_semantics<parallel>], iteration_bounds = array<i64: 2>, scalar_prefetch = 0 : i64, scratch_operands = 0 : i64, tpu.core_type = #tpu.core_type<tc>, window_params = [{transform_indices = @transform_0, window_bounds = array<i64: 32, 16>}, {pipeline_mode = #tpu.pipeline_mode<synchronous>, transform_indices = @transform_1, window_bounds = array<i64: 17, 128>}, {pipeline_mode = #tpu.pipeline_mode<synchronous>, transform_indices = @transform_2, window_bounds = array<i64: 129, 128>}, {pipeline_mode = #tpu.pipeline_mode<synchronous>, transform_indices = @transform_3, window_bounds = array<i64: 129, 128>}, {transform_indices = @transform_4, window_bounds = array<i64: 32, 128>}]} {
    %c0 = arith.constant 0 : index
    %c0_0 = arith.constant 0 : index
    %0 = vector.load %arg1[%c0, %c0_0] : memref<32x16xf32, #tpu.memory_space<vmem>>, vector<32x16xf32>
    %c0_1 = arith.constant 0 : index
    %c0_2 = arith.constant 0 : index
    %1 = vector.load %arg2[%c0_1, %c0_2] : memref<17x128xf32, #tpu.memory_space<vmem>>, vector<16x128xf32>
    %c16 = arith.constant 16 : index
    %c0_3 = arith.constant 0 : index
    %2 = vector.load %arg2[%c16, %c0_3] : memref<17x128xf32, #tpu.memory_space<vmem>>, vector<1x128xf32>
    %c0_4 = arith.constant 0 : index
    %c0_5 = arith.constant 0 : index
    %3 = vector.load %arg3[%c0_4, %c0_5] : memref<129x128xf32, #tpu.memory_space<vmem>>, vector<128x128xf32>
    %c128 = arith.constant 128 : index
    %c0_6 = arith.constant 0 : index
    %4 = vector.load %arg3[%c128, %c0_6] : memref<129x128xf32, #tpu.memory_space<vmem>>, vector<1x128xf32>
    %c0_7 = arith.constant 0 : index
    %c0_8 = arith.constant 0 : index
    %5 = vector.load %arg4[%c0_7, %c0_8] : memref<129x128xf32, #tpu.memory_space<vmem>>, vector<128x128xf32>
    %c128_9 = arith.constant 128 : index
    %c0_10 = arith.constant 0 : index
    %6 = vector.load %arg4[%c128_9, %c0_10] : memref<129x128xf32, #tpu.memory_space<vmem>>, vector<1x128xf32>
    %cst = arith.constant dense<0.000000e+00> : vector<32x128xf32>
    %7 = tpu.matmul %0, %1, %cst {dimension_numbers = #tpu.dot_dimension_numbers<[1], [0], [0], [1], [0, 0, 1, 1], [], []>} : vector<32x16xf32>, vector<16x128xf32>, vector<32x128xf32> -> vector<32x128xf32>
    %8 = vector.broadcast %2 : vector<1x128xf32> to vector<32x128xf32>
    %9 = arith.addf %7, %8 : vector<32x128xf32>
    %cst_11 = arith.constant 0.000000e+00 : f32
    %10 = vector.broadcast %cst_11 : f32 to vector<32x128xf32>
    %11 = arith.maximumf %9, %10 : vector<32x128xf32>
    %cst_12 = arith.constant dense<0.000000e+00> : vector<32x128xf32>
    %12 = tpu.matmul %11, %3, %cst_12 {dimension_numbers = #tpu.dot_dimension_numbers<[1], [0], [0], [1], [0, 0, 1, 1], [], []>} : vector<32x128xf32>, vector<128x128xf32>, vector<32x128xf32> -> vector<32x128xf32>
    %13 = vector.broadcast %4 : vector<1x128xf32> to vector<32x128xf32>
    %14 = arith.addf %12, %13 : vector<32x128xf32>
    %cst_13 = arith.constant 0.000000e+00 : f32
    %15 = vector.broadcast %cst_13 : f32 to vector<32x128xf32>
    %16 = arith.maximumf %14, %15 : vector<32x128xf32>
    %cst_14 = arith.constant dense<0.000000e+00> : vector<32x128xf32>
    %17 = tpu.matmul %16, %5, %cst_14 {dimension_numbers = #tpu.dot_dimension_numbers<[1], [0], [0], [1], [0, 0, 1, 1], [], []>} : vector<32x128xf32>, vector<128x128xf32>, vector<32x128xf32> -> vector<32x128xf32>
    %18 = vector.broadcast %6 : vector<1x128xf32> to vector<32x128xf32>
    %19 = arith.addf %17, %18 : vector<32x128xf32>
    %20 = tpu.iota {dimensions = array<i32: 1>} : vector<32x128xi32>
    %c8_i32 = arith.constant 8 : i32
    %21 = vector.broadcast %c8_i32 : i32 to vector<32x128xi32>
    %22 = arith.cmpi sge, %20, %21 : vector<32x128xi32>
    %c16_i32 = arith.constant 16 : i32
    %23 = vector.broadcast %c16_i32 : i32 to vector<32x128xi32>
    %24 = arith.cmpi slt, %20, %23 : vector<32x128xi32>
    %25 = arith.andi %22, %24 : vector<32x128xi1>
    %cst_15 = arith.constant -2.000000e+01 : f32
    %cst_16 = arith.constant 2.000000e+00 : f32
    %26 = vector.broadcast %cst_15 : f32 to vector<32x128xf32>
    %27 = arith.maximumf %26, %19 : vector<32x128xf32>
    %28 = vector.broadcast %cst_16 : f32 to vector<32x128xf32>
    %29 = arith.minimumf %28, %27 : vector<32x128xf32>
    %30 = math.exp %29 : vector<32x128xf32>
    %31 = arith.select %25, %30, %19 : vector<32x128xi1>, vector<32x128xf32>
    %c0_17 = arith.constant 0 : index
    %c0_18 = arith.constant 0 : index
    %32 = vector.load %arg5[%c0_17, %c0_18] : memref<32x128xf32, #tpu.memory_space<vmem>>, vector<32x128xf32>
    tpu.vector_store %arg5[%c0_17, %c0_18], %31 {strides = array<i32>} : memref<32x128xf32, #tpu.memory_space<vmem>>, vector<32x128xf32>,
    return
  }
  func.func @transform_0(%arg0: i32) -> (i32, i32) {
    %c0_i32 = arith.constant 0 : i32
    %c0_i32_0 = arith.constant 0 : i32
    return %arg0, %c0_i32 : i32, i32
  }
  func.func @transform_1(%arg0: i32) -> (i32, i32) {
    %c0_i32 = arith.constant 0 : i32
    %c0_i32_0 = arith.constant 0 : i32
    %c0_i32_1 = arith.constant 0 : i32
    return %c0_i32, %c0_i32_0 : i32, i32
  }
  func.func @transform_2(%arg0: i32) -> (i32, i32) {
    %c0_i32 = arith.constant 0 : i32
    %c0_i32_0 = arith.constant 0 : i32
    %c0_i32_1 = arith.constant 0 : i32
    return %c0_i32, %c0_i32_0 : i32, i32
  }
  func.func @transform_3(%arg0: i32) -> (i32, i32) {
    %c0_i32 = arith.constant 0 : i32
    %c0_i32_0 = arith.constant 0 : i32
    %c0_i32_1 = arith.constant 0 : i32
    return %c0_i32, %c0_i32_0 : i32, i32
  }
  func.func @transform_4(%arg0: i32) -> (i32, i32) {
    %c0_i32 = arith.constant 0 : i32
    %c0_i32_0 = arith.constant 0 : i32
    return %arg0, %c0_i32 : i32, i32
  }
}

</mosaic_0001>

<llo_original>
// kernel: tpu_custom_call.1
$region0: #{tpu_custom_call.1}
  #allocation0 [shape = 'u32[]', space=smem, size = 0x4, offset = 0x4, fixed_abs, tag = 'smem constant byte address 0x4 - core index']
  #allocation1 [shape = 'u32[144,128]{1,0:T(1,128)}', space=vmem, size = 0x12000, scoped, tag = 'internal scratch']
  %s0 = inlined_call_operand.vmem [shape: f32[64,16], index: 0, kind: input, shape index: {}]
  %s1 = inlined_call_operand.vmem [shape: f32[17,128], index: 1, kind: input, shape index: {}]
  %s2 = inlined_call_operand.hbm [shape: f32[129,128], index: 2, kind: input, shape index: {}]
  %s3 = inlined_call_operand.hbm [shape: f32[129,128], index: 3, kind: input, shape index: {}]
  %s4 = inlined_call_operand.hbm [shape: f32[64,128], index: 4, kind: output, shape index: {}]
  %s5 = sld [smem:[#allocation0]]
  $region57: #{tpu_custom_call.1} parent=0
    _
  %s7 = ssub.s32 1, %s5
  %s8 = scalar_select 0, %s7, %s5
  $region1: #{tpu_custom_call.1} parent=0
    #allocation2 [shape = 'u8[69632]{0}', space=vmem, size = 0x11000, scoped, tag = 'input window, operand 2, single buffered']
    #allocation3 [shape = 's32[2]{0}', space=sflag, size = 0x8, scoped, tag = 'scoped memory for tpu_custom_call.1']
    #allocation4 [shape = 's32[2]{0}', space=sflag, size = 0x8, scoped, tag = 'scoped memory for tpu_custom_call.1']
    #allocation5 [shape = 'u8[69632]{0}', space=vmem, size = 0x11000, scoped, tag = 'input window, operand 3, single buffered']
    #allocation6 [shape = 's32[1]{0}', space=sflag, size = 0x4, scoped, tag = 'scoped memory for tpu_custom_call.1']
    #allocation7 [shape = 'u8[32768]{0}', space=vmem, size = 0x8000, scoped, tag = 'output window, operand 0']
    %9 = vsyncpa [#allocation3], 0
    %10 = vsyncpa [#allocation6], 0
    %11 = vsyncpa [#allocation4], 0
    %s12 = scalar_lea.sflag [#allocation4], 1
    %13 = vsyncpa %s12, 0
    loop: start=0, step=1, limit=4
    $region2: #{tpu_custom_call.1} parent=1 // loop_pre_header
      _
    $region3: #{tpu_custom_call.1} parent=1 // loop_header
      %s15 = sphi 0, %s19
      %p16 = scmp.ge.s32.totalorder %s15, 4
      %s25 = sphi 0, %s27
      %s28 = sphi 0, %s25
      %s29 = sphi 0, %s28
      %s45 = sphi 0, %s29
      %s49 = sphi 0, %s49
      %s51 = sphi 0, %s49
      %s52 = sphi 0, %s51
      %s66 = sphi 0, %s52
      %s70 = sphi 0, %s70
      %s72 = sphi 0, %s70
      %s73 = sphi 0, %s72
      %s87 = sphi 0, %s73
      %s91 = sphi 0, %s91
      %s93 = sphi 0, %s91
      %s94 = sphi 0, %s93
      %s108 = sphi 0, %s94
      %s114 = sphi 0, %s116
      %s117 = sphi 0, %s114
      %s118 = sphi 0, %s117
      %s134 = sphi 0, %s118
    $region4: #{tpu_custom_call.1} parent=1 // loop_header_branch
      %18 = sbr.rel (%p16) target = $region8
    $region5: #{tpu_custom_call.1} parent=1 // loop_body
      %s20 = ssub.s32 %s15, 1
      %s21 = ssub.s32 %s15, 2
      %s22 = sadd.s32 %s15, 1
      %s23 = ssub.s32 %s15, %s22
      %p24 = scmp.eq.s32.totalorder %s23, 0
      %s26 = sadd.s32 %s25, 1
      %s27 = scalar_select %p24, %s25, %s26
      %p30 = pneg %p24
      %p31 = scmp.eq.s32.totalorder %s15, 1
      %p32 = por %p30, %p31
      %p33 = scmp.ne.s32.totalorder %s25, %s28
      %p34 = scmp.eq.s32.totalorder %s15, 0
      %p35 = por %p33, %p34
      %p36 = scmp.ne.s32.totalorder %s25, %s28
      %p37 = scmp.eq.s32.totalorder %s20, 1
      %p38 = por %p36, %p37
      %p39 = scmp.ne.s32.totalorder %s28, %s29
      %p40 = scmp.eq.s32.totalorder %s20, 0
      %p41 = por %p39, %p40
      %p42 = scmp.ne.s32.totalorder %s28, %s29
      %p43 = scmp.eq.s32.totalorder %s21, 1
      %p44 = por %p42, %p43
      %p46 = scmp.ne.s32.totalorder %s29, %s45
      %p47 = scmp.eq.s32.totalorder %s21, 0
      %p48 = por %p46, %p47
      %s50 = sadd.s32 %s49, 1
      %p53 = scmp.eq.s32.totalorder %s15, 1
      %p54 = scmp.ne.s32.totalorder %s49, %s51
      %p55 = scmp.eq.s32.totalorder %s15, 0
      %p56 = por %p54, %p55
      %p57 = scmp.ne.s32.totalorder %s49, %s51
      %p58 = scmp.eq.s32.totalorder %s20, 1
      %p59 = por %p57, %p58
      %p60 = scmp.ne.s32.totalorder %s51, %s52
      %p61 = scmp.eq.s32.totalorder %s20, 0
      %p62 = por %p60, %p61
      %p63 = scmp.ne.s32.totalorder %s51, %s52
      %p64 = scmp.eq.s32.totalorder %s21, 1
      %p65 = por %p63, %p64
      %p67 = scmp.ne.s32.totalorder %s52, %s66
      %p68 = scmp.eq.s32.totalorder %s21, 0
      %p69 = por %p67, %p68
      %s71 = sadd.s32 %s70, 1
      %p74 = scmp.eq.s32.totalorder %s15, 1
      %p75 = scmp.ne.s32.totalorder %s70, %s72
      %p76 = scmp.eq.s32.totalorder %s15, 0
      %p77 = por %p75, %p76
      %p78 = scmp.ne.s32.totalorder %s70, %s72
      %p79 = scmp.eq.s32.totalorder %s20, 1
      %p80 = por %p78, %p79
      %p81 = scmp.ne.s32.totalorder %s72, %s73
      %p82 = scmp.eq.s32.totalorder %s20, 0
      %p83 = por %p81, %p82
      %p84 = scmp.ne.s32.totalorder %s72, %s73
      %p85 = scmp.eq.s32.totalorder %s21, 1
      %p86 = por %p84, %p85
      %p88 = scmp.ne.s32.totalorder %s73, %s87
      %p89 = scmp.eq.s32.totalorder %s21, 0
      %p90 = por %p88, %p89
      %s92 = sadd.s32 %s91, 1
      %p95 = scmp.eq.s32.totalorder %s15, 1
      %p96 = scmp.ne.s32.totalorder %s91, %s93
      %p97 = scmp.eq.s32.totalorder %s15, 0
      %p98 = por %p96, %p97
      %p99 = scmp.ne.s32.totalorder %s91, %s93
      %p100 = scmp.eq.s32.totalorder %s20, 1
      %p101 = por %p99, %p100
      %p102 = scmp.ne.s32.totalorder %s93, %s94
      %p103 = scmp.eq.s32.totalorder %s20, 0
      %p104 = por %p102, %p103
      %p105 = scmp.ne.s32.totalorder %s93, %s94
      %p106 = scmp.eq.s32.totalorder %s21, 1
      %p107 = por %p105, %p106
      %p109 = scmp.ne.s32.totalorder %s94, %s108
      %p110 = scmp.eq.s32.totalorder %s21, 0
      %p111 = por %p109, %p110
      %s112 = ssub.s32 %s15, %s22
      %p113 = scmp.eq.s32.totalorder %s112, 0
      %s115 = sadd.s32 %s114, 1
      %s116 = scalar_select %p113, %s114, %s115
      %p119 = pneg %p113
      %p120 = scmp.eq.s32.totalorder %s15, 1
      %p121 = por %p119, %p120
      %p122 = scmp.ne.s32.totalorder %s114, %s117
      %p123 = scmp.eq.s32.totalorder %s15, 0
      %p124 = por %p122, %p123
      %p125 = scmp.ne.s32.totalorder %s114, %s117
      %p126 = scmp.eq.s32.totalorder %s20, 1
      %p127 = por %p125, %p126
      %p128 = scmp.ne.s32.totalorder %s117, %s118
      %p129 = scmp.eq.s32.totalorder %s20, 0
      %p130 = por %p128, %p129
      %p131 = scmp.ne.s32.totalorder %s117, %s118
      %p132 = scmp.eq.s32.totalorder %s21, 1
      %p133 = por %p131, %p132
      %p135 = scmp.ne.s32.totalorder %s118, %s134
      %p136 = scmp.eq.s32.totalorder %s21, 0
      %p137 = por %p135, %p136
      %p138 = scmp.le.s32.totalorder 1, %s15
      %p139 = scmp.lt.s32.totalorder %s15, 3
      %p140 = pnand %p138, %p139
      %p141 = pneg %p140
      // Predicated region
      $region9: #{tpu_custom_call.1} parent=5 // pred_check
        _
      $region10: #{tpu_custom_call.1} parent=5 // pred_check_branch
        %143 = sbr.rel (%p140) target = $region12
      $region11: #{tpu_custom_call.1} parent=5 // pred_region
        %s144 = ssub.s32 %s15, 1
        // Predicated region
        $region13: #{tpu_custom_call.1} parent=11 // pred_check
          %p145 = pneg %p62
        $region14: #{tpu_custom_call.1} parent=11 // pred_check_branch
          %147 = sbr.rel (%p145) target = $region16
        $region15: #{tpu_custom_call.1} parent=11 // pred_region
          _
        $region16: #{tpu_custom_call.1} parent=11 // pred_fallthru
          _
        // Predicated region
        $region17: #{tpu_custom_call.1} parent=11 // pred_check
          %p148 = pneg %p83
        $region18: #{tpu_custom_call.1} parent=11 // pred_check_branch
          %150 = sbr.rel (%p148) target = $region20
        $region19: #{tpu_custom_call.1} parent=11 // pred_region
          %s152 = ssub.s32 2176, 2176
          %153 = vsyncadd [#allocation3], %s152
          %s154 = sshll.u32 [#allocation2], 4
          %s155 = int_to_ptr.vmem [resolvable:$true] %s154
          %160 = dma.hbm_to_vmem [thread:$0]  %s2, 2176, %s155, [#allocation3], 128, 128, 8
        $region20: #{tpu_custom_call.1} parent=11 // pred_fallthru
          _
        // Predicated region
        $region21: #{tpu_custom_call.1} parent=11 // pred_check
          %p161 = pneg %p104
        $region22: #{tpu_custom_call.1} parent=11 // pred_check_branch
          %163 = sbr.rel (%p161) target = $region24
        $region23: #{tpu_custom_call.1} parent=11 // pred_region
          %s165 = ssub.s32 2176, 2176
          %166 = vsyncadd [#allocation6], %s165
          %s167 = sshll.u32 [#allocation5], 4
          %s168 = int_to_ptr.vmem [resolvable:$true] %s167
          %173 = dma.hbm_to_vmem [thread:$0]  %s3, 2176, %s168, [#allocation6], 128, 128, 8
        $region24: #{tpu_custom_call.1} parent=11 // pred_fallthru
          _
      $region12: #{tpu_custom_call.1} parent=5 // pred_fallthru
        _
      %p174 = scmp.lt.s32.totalorder %s15, 2
      // Predicated region
      $region25: #{tpu_custom_call.1} parent=5 // pred_check
        %p175 = pneg %p174
      $region26: #{tpu_custom_call.1} parent=5 // pred_check_branch
        %177 = sbr.rel (%p175) target = $region28
      $region27: #{tpu_custom_call.1} parent=5 // pred_region
        // Predicated region
        $region29: #{tpu_custom_call.1} parent=27 // pred_check
          %p178 = pneg %p35
        $region30: #{tpu_custom_call.1} parent=27 // pred_check_branch
          %180 = sbr.rel (%p178) target = $region32
        $region31: #{tpu_custom_call.1} parent=27 // pred_region
          %s181 = smul.u32 4, %s15
          %p182 = scmp.lt.s32.totalorder %s181, 7
          %s183 = scalar_select %p182, %s181, 7
          %s184 = smul.addr %s183, 8
          %s185 = scalar_lea.vmem %s0, %s184
          %s186 = smul.u32 4, %s15
        $region32: #{tpu_custom_call.1} parent=27 // pred_fallthru
          _
      $region28: #{tpu_custom_call.1} parent=5 // pred_fallthru
        _
      %p187 = scmp.le.s32.totalorder 1, %s15
      %p188 = scmp.lt.s32.totalorder %s15, 3
      %p189 = pnand %p187, %p188
      %p190 = pneg %p189
      // Predicated region
      $region33: #{tpu_custom_call.1} parent=5 // pred_check
        _
      $region34: #{tpu_custom_call.1} parent=5 // pred_check_branch
        %192 = sbr.rel (%p189) target = $region36
      $region35: #{tpu_custom_call.1} parent=5 // pred_region
        %s193 = ssub.s32 %s15, 1
        // Predicated region
        $region37: #{tpu_custom_call.1} parent=35 // pred_check
          %p194 = pneg %p83
        $region38: #{tpu_custom_call.1} parent=35 // pred_check_branch
          %196 = sbr.rel (%p194) target = $region40
        $region39: #{tpu_custom_call.1} parent=35 // pred_region
          %197 = dma.done [#allocation3], 2176
        $region40: #{tpu_custom_call.1} parent=35 // pred_fallthru
          _
        // Predicated region
        $region41: #{tpu_custom_call.1} parent=35 // pred_check
          %p198 = pneg %p104
        $region42: #{tpu_custom_call.1} parent=35 // pred_check_branch
          %200 = sbr.rel (%p198) target = $region44
        $region43: #{tpu_custom_call.1} parent=35 // pred_region
          %201 = dma.done [#allocation6], 2176
        $region44: #{tpu_custom_call.1} parent=35 // pred_fallthru
          _
        %s202 = smul.u32 4, %s20
        %p203 = scmp.lt.s32.totalorder %s202, 7
        %s204 = scalar_select %p203, %s202, 7
        %s205 = smul.addr %s204, 8
        %s206 = scalar_lea.vmem %s0, %s205
        %p207 = pneg %p41
        %p208 = pneg %p38
        %p209 = pneg %p62
        %p210 = pneg %p59
        %p211 = pneg %p83
        %p212 = pneg %p80
        %p213 = pneg %p104
        %p214 = pneg %p101
        %p215 = pneg %p130
        %p216 = pneg %p127
        %s217 = sand.u32 %s117, 1
        %s218 = scalar_lea.sflag [#allocation4], %s217
        %s219 = sand.u32 %s117, 1
        %s220 = smul.addr %s219, 32
        %s221 = scalar_lea.vmem [#allocation7], %s220
        %s222 = smul.u32 4, %s20
        %p223 = scmp.lt.s32.totalorder %s222, 7
        %s224 = scalar_select %p223, %s222, 7
        %s225 = smul.addr %s224, 8
        %s226 = scalar_lea.vmem %s0, %s225
        %s227 = smul.u32 4, %s20
        %s228 = smul.u32 4, %s20
        %v229 = vld [vmem:[%s226] sm:$0xff]
        %v230 = vld [vmem:[%s226 + $0x8] sm:$0xff]
        %v231 = vld [vmem:[%s226 + $0x10] sm:$0xff]
        %v232 = vld [vmem:[%s226 + $0x18] sm:$0xff]
        %v233 = vld [vmem:[%s1] sm:$0xff]
        %v234 = vld [vmem:[%s1 + $0x8] sm:$0xff]
        %v235 = vld [vmem:[%s1 + $0x10] sm:$0x1]
        %v236 = vld [vmem:[#allocation2] sm:$0xff]
        %v237 = vld [vmem:[#allocation2 + $0x8] sm:$0xff]
        %v238 = vld [vmem:[#allocation2 + $0x10] sm:$0xff]
        %v239 = vld [vmem:[#allocation2 + $0x18] sm:$0xff]
        %v240 = vld [vmem:[#allocation2 + $0x20] sm:$0xff]
        %v241 = vld [vmem:[#allocation2 + $0x28] sm:$0xff]
        %v242 = vld [vmem:[#allocation2 + $0x30] sm:$0xff]
        %v243 = vld [vmem:[#allocation2 + $0x38] sm:$0xff]
        %v244 = vld [vmem:[#allocation2 + $0x40] sm:$0xff]
        %v245 = vld [vmem:[#allocation2 + $0x48] sm:$0xff]
        %v246 = vld [vmem:[#allocation2 + $0x50] sm:$0xff]
        %v247 = vld [vmem:[#allocation2 + $0x58] sm:$0xff]
        %v248 = vld [vmem:[#allocation2 + $0x60] sm:$0xff]
        %v249 = vld [vmem:[#allocation2 + $0x68] sm:$0xff]
        %v250 = vld [vmem:[#allocation2 + $0x70] sm:$0xff]
        %v251 = vld [vmem:[#allocation2 + $0x78] sm:$0xff]
        %v252 = vld [vmem:[#allocation2 + $0x80] sm:$0x1]
        %v253 = vld [vmem:[#allocation5] sm:$0xff]
        %v254 = vld [vmem:[#allocation5 + $0x8] sm:$0xff]
        %v255 = vld [vmem:[#allocation5 + $0x10] sm:$0xff]
        %v256 = vld [vmem:[#allocation5 + $0x18] sm:$0xff]
        %v257 = vld [vmem:[#allocation5 + $0x20] sm:$0xff]
        %v258 = vld [vmem:[#allocation5 + $0x28] sm:$0xff]
        %v259 = vld [vmem:[#allocation5 + $0x30] sm:$0xff]
        %v260 = vld [vmem:[#allocation5 + $0x38] sm:$0xff]
        %v261 = vld [vmem:[#allocation5 + $0x40] sm:$0xff]
        %v262 = vld [vmem:[#allocation5 + $0x48] sm:$0xff]
        %v263 = vld [vmem:[#allocation5 + $0x50] sm:$0xff]
        %v264 = vld [vmem:[#allocation5 + $0x58] sm:$0xff]
        %v265 = vld [vmem:[#allocation5 + $0x60] sm:$0xff]
        %v266 = vld [vmem:[#allocation5 + $0x68] sm:$0xff]
        %v267 = vld [vmem:[#allocation5 + $0x70] sm:$0xff]
        %v268 = vld [vmem:[#allocation5 + $0x78] sm:$0xff]
        %v269 = vld [vmem:[#allocation5 + $0x80] sm:$0x1]
        %v270 = vlaneseq
        %v271 = vshrl.u32 %v270, 7
        %v272 = vsub.s32 0, %v271
        %v273 = vrot.slane %v235, %v272
        %vm274 = vcmask 130048
        %v276 = vsel %vm274, %v229, 0
        %v279 = vsel %vm274, %v230, 0
        %v282 = vsel %vm274, %v231, 0
        %v285 = vsel %vm274, %v232, 0
        %287 = vmatprep.subr.mxu0 0.0
        %288 = vmatpush1.msra.mxu0 %v233
        %289 = vmatprep.subr.mxu0 0.0
        %290 = vmatpush1.msra.mxu0 %v234
        %291 = vmatprep.subr.mxu0 0.0
        %292 = vmatpush1.msra.mxu0 0.0
        %293 = vmatprep.subr.mxu0 0.0
        %294 = vmatpush1.msra.mxu0 0.0
        %295 = vmatprep.subr.mxu0 0.0
        %296 = vmatpush1.msra.mxu0 0.0
        %297 = vmatprep.subr.mxu0 0.0
        %298 = vmatpush1.msra.mxu0 0.0
        %299 = vmatprep.subr.mxu0 0.0
        %300 = vmatpush1.msra.mxu0 0.0
        %301 = vmatprep.subr.mxu0 0.0
        %302 = vmatpush1.msra.mxu0 0.0
        %303 = vmatprep.subr.mxu0 0.0
        %304 = vmatpush1.msra.mxu0 0.0
        %305 = vmatprep.subr.mxu0 0.0
        %306 = vmatpush1.msra.mxu0 0.0
        %307 = vmatprep.subr.mxu0 0.0
        %308 = vmatpush1.msra.mxu0 0.0
        %309 = vmatprep.subr.mxu0 0.0
        %310 = vmatpush1.msra.mxu0 0.0
        %311 = vmatprep.subr.mxu0 0.0
        %312 = vmatpush1.msra.mxu0 0.0
        %313 = vmatprep.subr.mxu0 0.0
        %314 = vmatpush1.msra.mxu0 0.0
        %315 = vmatprep.subr.mxu0 0.0
        %316 = vmatpush1.msra.mxu0 0.0
        %317 = vmatprep.subr.mxu0 0.0
        %318 = vmatpush1.msra.mxu0 0.0
        %319 = vmatprep.subr.mxu0 0.0
        %320 = vmatpush1.msra.mxu0 0.0
        %321 = vmatprep.subr.mxu0 0.0
        %322 = vmatpush1.msra.mxu0 0.0
        %323 = vmatprep.subr.mxu0 0.0
        %324 = vmatpush1.msra.mxu0 0.0
        %325 = vmatprep.subr.mxu0 0.0
        %326 = vmatpush1.msra.mxu0 0.0
        %327 = vmatprep.subr.mxu0 0.0
        %328 = vmatpush1.msra.mxu0 0.0
        %329 = vmatprep.subr.mxu0 0.0
        %330 = vmatpush1.msra.mxu0 0.0
        %331 = vmatprep.subr.mxu0 0.0
        %332 = vmatpush1.msra.mxu0 0.0
        %333 = vmatprep.subr.mxu0 0.0
        %334 = vmatpush1.msra.mxu0 0.0
        %335 = vmatprep.subr.mxu0 0.0
        %336 = vmatpush1.msra.mxu0 0.0
        %337 = vmatprep.subr.mxu0 0.0
        %338 = vmatpush1.msra.mxu0 0.0
        %339 = vmatprep.subr.mxu0 0.0
        %340 = vmatpush1.msra.mxu0 0.0
        %341 = vmatprep.subr.mxu0 0.0
        %342 = vmatpush1.msra.mxu0 0.0
        %343 = vmatprep.subr.mxu0 0.0
        %344 = vmatpush1.msra.mxu0 0.0
        %345 = vmatprep.subr.mxu0 0.0
        %346 = vmatpush1.msra.mxu0 0.0
        %347 = vmatprep.subr.mxu0 0.0
        %348 = vmatpush1.msra.mxu0 0.0
        %349 = vmatprep.subr.mxu0 0.0
        %350 = vmatpush1.msra.mxu0 0.0
        %351 = vmatprep.mubr.f32.mxu0 0.0
        %352 = vmatmul.mubr.f32.gmra.mrb[0].mxu0 %v276
        %v353 = vpop.f32.mrb[0].mxu0
        %v354 = vadd.f32 %v273, %v353
        %v355 = vpop.f32.mrb[0].mxu0
        %356 = vmatprep.mubr.f32.mxu0 0.0
        %357 = vmatmul.mubr.f32.gmra.mrb[0].mxu0 %v279
        %v358 = vpop.f32.mrb[0].mxu0
        %v359 = vadd.f32 %v273, %v358
        %v360 = vpop.f32.mrb[0].mxu0
        %361 = vmatprep.mubr.f32.mxu0 0.0
        %362 = vmatmul.mubr.f32.gmra.mrb[0].mxu0 %v282
        %v363 = vpop.f32.mrb[0].mxu0
        %v364 = vadd.f32 %v273, %v363
        %v365 = vpop.f32.mrb[0].mxu0
        %366 = vmatprep.mubr.f32.mxu0 0.0
        %367 = vmatmul.mubr.f32.gmra.mrb[0].mxu0 %v285
        %v368 = vpop.f32.mrb[0].mxu0
        %v369 = vadd.f32 %v273, %v368
        %v370 = vpop.f32.mrb[0].mxu0
        %371 = vdwg.mxu0
        %v372 = vmax.f32 %v354, 0.0
        %v373 = vmax.f32 %v359, 0.0
        %v374 = vmax.f32 %v364, 0.0
        %v375 = vmax.f32 %v369, 0.0
        %v376 = vlaneseq
        %v377 = vshrl.u32 %v376, 7
        %v378 = vsub.s32 0, %v377
        %v379 = vrot.slane %v252, %v378
        %380 = vmatprep.subr.mxu0 0.0
        %381 = vmatpush1.msra.mxu0 %v236
        %382 = vmatprep.subr.mxu0 0.0
        %383 = vmatpush1.msra.mxu0 %v237
        %384 = vmatprep.subr.mxu0 0.0
        %385 = vmatpush1.msra.mxu0 %v238
        %386 = vmatprep.subr.mxu0 0.0
        %387 = vmatpush1.msra.mxu0 %v239
        %388 = vmatprep.subr.mxu0 0.0
        %389 = vmatpush1.msra.mxu0 %v240
        %390 = vmatprep.subr.mxu0 0.0
        %391 = vmatpush1.msra.mxu0 %v241
        %392 = vmatprep.subr.mxu0 0.0
        %393 = vmatpush1.msra.mxu0 %v242
        %394 = vmatprep.subr.mxu0 0.0
        %395 = vmatpush1.msra.mxu0 %v243
        %396 = vmatprep.subr.mxu0 0.0
        %397 = vmatpush1.msra.mxu0 %v244
        %398 = vmatprep.subr.mxu0 0.0
        %399 = vmatpush1.msra.mxu0 %v245
        %400 = vmatprep.subr.mxu0 0.0
        %401 = vmatpush1.msra.mxu0 %v246
        %402 = vmatprep.subr.mxu0 0.0
        %403 = vmatpush1.msra.mxu0 %v247
        %404 = vmatprep.subr.mxu0 0.0
        %405 = vmatpush1.msra.mxu0 %v248
        %406 = vmatprep.subr.mxu0 0.0
        %407 = vmatpush1.msra.mxu0 %v249
        %408 = vmatprep.subr.mxu0 0.0
        %409 = vmatpush1.msra.mxu0 %v250
        %410 = vmatprep.subr.mxu0 0.0
        %411 = vmatpush1.msra.mxu0 %v251
        %412 = vmatprep.subr.mxu0 0.0
        %413 = vmatpush1.msra.mxu0 0.0
        %414 = vmatprep.subr.mxu0 0.0
        %415 = vmatpush1.msra.mxu0 0.0
        %416 = vmatprep.subr.mxu0 0.0
        %417 = vmatpush1.msra.mxu0 0.0
        %418 = vmatprep.subr.mxu0 0.0
        %419 = vmatpush1.msra.mxu0 0.0
        %420 = vmatprep.subr.mxu0 0.0
        %421 = vmatpush1.msra.mxu0 0.0
        %422 = vmatprep.subr.mxu0 0.0
        %423 = vmatpush1.msra.mxu0 0.0
        %424 = vmatprep.subr.mxu0 0.0
        %425 = vmatpush1.msra.mxu0 0.0
        %426 = vmatprep.subr.mxu0 0.0
        %427 = vmatpush1.msra.mxu0 0.0
        %428 = vmatprep.subr.mxu0 0.0
        %429 = vmatpush1.msra.mxu0 0.0
        %430 = vmatprep.subr.mxu0 0.0
        %431 = vmatpush1.msra.mxu0 0.0
        %432 = vmatprep.subr.mxu0 0.0
        %433 = vmatpush1.msra.mxu0 0.0
        %434 = vmatprep.subr.mxu0 0.0
        %435 = vmatpush1.msra.mxu0 0.0
        %436 = vmatprep.subr.mxu0 0.0
        %437 = vmatpush1.msra.mxu0 0.0
        %438 = vmatprep.subr.mxu0 0.0
        %439 = vmatpush1.msra.mxu0 0.0
        %440 = vmatprep.subr.mxu0 0.0
        %441 = vmatpush1.msra.mxu0 0.0
        %442 = vmatprep.subr.mxu0 0.0
        %443 = vmatpush1.msra.mxu0 0.0
        %444 = vmatprep.mubr.f32.mxu0 0.0
        %445 = vmatmul.mubr.f32.gmra.mrb[0].mxu0 %v372
        %v446 = vpop.f32.mrb[0].mxu0
        %v447 = vadd.f32 %v379, %v446
        %v448 = vpop.f32.mrb[0].mxu0
        %449 = vmatprep.mubr.f32.mxu0 0.0
        %450 = vmatmul.mubr.f32.gmra.mrb[0].mxu0 %v373
        %v451 = vpop.f32.mrb[0].mxu0
        %v452 = vadd.f32 %v379, %v451
        %v453 = vpop.f32.mrb[0].mxu0
        %454 = vmatprep.mubr.f32.mxu0 0.0
        %455 = vmatmul.mubr.f32.gmra.mrb[0].mxu0 %v374
        %v456 = vpop.f32.mrb[0].mxu0
        %v457 = vadd.f32 %v379, %v456
        %v458 = vpop.f32.mrb[0].mxu0
        %459 = vmatprep.mubr.f32.mxu0 0.0
        %460 = vmatmul.mubr.f32.gmra.mrb[0].mxu0 %v375
        %v461 = vpop.f32.mrb[0].mxu0
        %v462 = vadd.f32 %v379, %v461
        %v463 = vpop.f32.mrb[0].mxu0
        %464 = vdwg.mxu0
        %v465 = vmax.f32 %v447, 0.0
        %v466 = vmax.f32 %v452, 0.0
        %v467 = vmax.f32 %v457, 0.0
        %v468 = vmax.f32 %v462, 0.0
        %v469 = vlaneseq
        %v470 = vshrl.u32 %v469, 7
        %v471 = vsub.s32 0, %v470
        %v472 = vrot.slane %v269, %v471
        %473 = vmatprep.subr.mxu0 0.0
        %474 = vmatpush1.msra.mxu0 %v253
        %475 = vmatprep.subr.mxu0 0.0
        %476 = vmatpush1.msra.mxu0 %v254
        %477 = vmatprep.subr.mxu0 0.0
        %478 = vmatpush1.msra.mxu0 %v255
        %479 = vmatprep.subr.mxu0 0.0
        %480 = vmatpush1.msra.mxu0 %v256
        %481 = vmatprep.subr.mxu0 0.0
        %482 = vmatpush1.msra.mxu0 %v257
        %483 = vmatprep.subr.mxu0 0.0
        %484 = vmatpush1.msra.mxu0 %v258
        %485 = vmatprep.subr.mxu0 0.0
        %486 = vmatpush1.msra.mxu0 %v259
        %487 = vmatprep.subr.mxu0 0.0
        %488 = vmatpush1.msra.mxu0 %v260
        %489 = vmatprep.subr.mxu0 0.0
        %490 = vmatpush1.msra.mxu0 %v261
        %491 = vmatprep.subr.mxu0 0.0
        %492 = vmatpush1.msra.mxu0 %v262
        %493 = vmatprep.subr.mxu0 0.0
        %494 = vmatpush1.msra.mxu0 %v263
        %495 = vmatprep.subr.mxu0 0.0
        %496 = vmatpush1.msra.mxu0 %v264
        %497 = vmatprep.subr.mxu0 0.0
        %498 = vmatpush1.msra.mxu0 %v265
        %499 = vmatprep.subr.mxu0 0.0
        %500 = vmatpush1.msra.mxu0 %v266
        %501 = vmatprep.subr.mxu0 0.0
        %502 = vmatpush1.msra.mxu0 %v267
        %503 = vmatprep.subr.mxu0 0.0
        %504 = vmatpush1.msra.mxu0 %v268
        %505 = vmatprep.subr.mxu0 0.0
        %506 = vmatpush1.msra.mxu0 0.0
        %507 = vmatprep.subr.mxu0 0.0
        %508 = vmatpush1.msra.mxu0 0.0
        %509 = vmatprep.subr.mxu0 0.0
        %510 = vmatpush1.msra.mxu0 0.0
        %511 = vmatprep.subr.mxu0 0.0
        %512 = vmatpush1.msra.mxu0 0.0
        %513 = vmatprep.subr.mxu0 0.0
        %514 = vmatpush1.msra.mxu0 0.0
        %515 = vmatprep.subr.mxu0 0.0
        %516 = vmatpush1.msra.mxu0 0.0
        %517 = vmatprep.subr.mxu0 0.0
        %518 = vmatpush1.msra.mxu0 0.0
        %519 = vmatprep.subr.mxu0 0.0
        %520 = vmatpush1.msra.mxu0 0.0
        %521 = vmatprep.subr.mxu0 0.0
        %522 = vmatpush1.msra.mxu0 0.0
        %523 = vmatprep.subr.mxu0 0.0
        %524 = vmatpush1.msra.mxu0 0.0
        %525 = vmatprep.subr.mxu0 0.0
        %526 = vmatpush1.msra.mxu0 0.0
        %527 = vmatprep.subr.mxu0 0.0
        %528 = vmatpush1.msra.mxu0 0.0
        %529 = vmatprep.subr.mxu0 0.0
        %530 = vmatpush1.msra.mxu0 0.0
        %531 = vmatprep.subr.mxu0 0.0
        %532 = vmatpush1.msra.mxu0 0.0
        %533 = vmatprep.subr.mxu0 0.0
        %534 = vmatpush1.msra.mxu0 0.0
        %535 = vmatprep.subr.mxu0 0.0
        %536 = vmatpush1.msra.mxu0 0.0
        %537 = vmatprep.mubr.f32.mxu0 0.0
        %538 = vmatmul.mubr.f32.gmra.mrb[0].mxu0 %v465
        %v539 = vpop.f32.mrb[0].mxu0
        %v540 = vadd.f32 %v472, %v539
        %v541 = vpop.f32.mrb[0].mxu0
        %542 = vmatprep.mubr.f32.mxu0 0.0
        %543 = vmatmul.mubr.f32.gmra.mrb[0].mxu0 %v466
        %v544 = vpop.f32.mrb[0].mxu0
        %v545 = vadd.f32 %v472, %v544
        %v546 = vpop.f32.mrb[0].mxu0
        %547 = vmatprep.mubr.f32.mxu0 0.0
        %548 = vmatmul.mubr.f32.gmra.mrb[0].mxu0 %v467
        %v549 = vpop.f32.mrb[0].mxu0
        %v550 = vadd.f32 %v472, %v549
        %v551 = vpop.f32.mrb[0].mxu0
        %552 = vmatprep.mubr.f32.mxu0 0.0
        %553 = vmatmul.mubr.f32.gmra.mrb[0].mxu0 %v468
        %v554 = vpop.f32.mrb[0].mxu0
        %v555 = vadd.f32 %v472, %v554
        %v556 = vpop.f32.mrb[0].mxu0
        %557 = vdwg.mxu0
        %v558 = vlaneseq
        %v559 = vand.u32 %v558, 127
        %vm560 = vcmp.ge.s32.totalorder %v559, 8
        %vm561 = vcmp.lt.s32.totalorder %v559, 16
        %vm562 = vmand %vm560, %vm561
        %v563 = vmax.f32 %v540, -20.0
        %v564 = vmax.f32 %v545, -20.0
        %v565 = vmax.f32 %v550, -20.0
        %v566 = vmax.f32 %v555, -20.0
        %v567 = vmin.f32 %v563, 2.0
        %v568 = vmin.f32 %v564, 2.0
        %v569 = vmin.f32 %v565, 2.0
        %v570 = vmin.f32 %v566, 2.0
        %v571 = vmul.f32 %v567, 1.442695
        %v572 = vpow.pop %v571
        %v573 = vmul.f32 %v568, 1.442695
        %v574 = vpow.pop %v573
        %v575 = vmul.f32 %v569, 1.442695
        %v576 = vpow.pop %v575
        %v577 = vmul.f32 %v570, 1.442695
        %v578 = vpow.pop %v577
        %v579 = vsel %vm562, %v572, %v540
        %v580 = vsel %vm562, %v574, %v545
        %v581 = vsel %vm562, %v576, %v550
        %v582 = vsel %vm562, %v578, %v555
        %583 = vst [vmem:[%s221] sm:$0xff] %v579
        %584 = vst [vmem:[%s221 + $0x8] sm:$0xff] %v580
        %585 = vst [vmem:[%s221 + $0x10] sm:$0xff] %v581
        %586 = vst [vmem:[%s221 + $0x18] sm:$0xff] %v582
        %s587 = sand.u32 %s117, 1
        %s588 = scalar_lea.sflag [#allocation4], %s587
        %s589 = sand.u32 %s117, 1
        %s590 = smul.addr %s589, 32
        %s591 = scalar_lea.vmem [#allocation7], %s590
        // Predicated region
        $region45: #{tpu_custom_call.1} parent=35 // pred_check
          %p592 = pneg %p127
        $region46: #{tpu_custom_call.1} parent=35 // pred_check_branch
          %594 = sbr.rel (%p592) target = $region48
        $region47: #{tpu_custom_call.1} parent=35 // pred_region
          %s595 = smul.u32 4, %s20
          %s597 = ssub.s32 512, 512
          %598 = vsyncadd %s588, %s597
          %s599 = smul.addr %s595, 128
          %s600 = scalar_lea.hbm %s4, %s599
          %s601 = sshll.u32 %s591, 4
          %s602 = int_to_ptr.vmem [resolvable:$true] %s601
          %607 = dma.vmem_to_hbm [thread:$0]  %s602, 512, %s600, %s588, 128, 128, 8
        $region48: #{tpu_custom_call.1} parent=35 // pred_fallthru
          _
      $region36: #{tpu_custom_call.1} parent=5 // pred_fallthru
        _
      %p608 = scmp.le.s32.totalorder 2, %s15
      // Predicated region
      $region49: #{tpu_custom_call.1} parent=5 // pred_check
        %p609 = pneg %p608
      $region50: #{tpu_custom_call.1} parent=5 // pred_check_branch
        %611 = sbr.rel (%p609) target = $region52
      $region51: #{tpu_custom_call.1} parent=5 // pred_region
        %s612 = ssub.s32 %s15, 2
        // Predicated region
        $region53: #{tpu_custom_call.1} parent=51 // pred_check
          %p613 = pneg %p133
        $region54: #{tpu_custom_call.1} parent=51 // pred_check_branch
          %615 = sbr.rel (%p613) target = $region56
        $region55: #{tpu_custom_call.1} parent=51 // pred_region
          %s616 = sand.u32 %s118, 1
          %s617 = scalar_lea.sflag [#allocation4], %s616
          %s618 = sand.u32 %s118, 1
          %s619 = smul.addr %s618, 32
          %s620 = scalar_lea.vmem [#allocation7], %s619
          %621 = dma.done %s617, 512
        $region56: #{tpu_custom_call.1} parent=51 // pred_fallthru
          _
      $region52: #{tpu_custom_call.1} parent=5 // pred_fallthru
        _
    $region6: #{tpu_custom_call.1} parent=1 // loop_footer
      %s19 = sadd.s32 1, %s15
    $region7: #{tpu_custom_call.1} parent=1 // loop_footer_branch
      %14 = sbr.rel target = $region3
    $region8: #{tpu_custom_call.1} parent=1 // loop_exit
      _
    %622 = vsyncpa [#allocation3], 1
    %s623 = scalar_lea.sflag [#allocation3], 1
    %624 = vsyncpa %s623, 1
    %625 = vsyncpa [#allocation6], 1
    %626 = vsyncpa [#allocation4], 1
    %s627 = scalar_lea.sflag [#allocation4], 1
    %628 = vsyncpa %s627, 1

</llo_original>
